<compile_context>
chip_gen: v7x
topology: tpu7x:2x2x1
jax: 0.10.0
libtpu: 0.0.40
codegen_flags: <defaults>
</compile_context>

<pallas_src>
import functools
import math

import jax
import jax.numpy as jnp
from jax.experimental import pallas as pl
from jax.experimental.pallas import tpu as pltpu

_BOXES_PER_ROW = 32           # boxes per 128-lane row (4 interleaved coords each)
_LANES = 4 * _BOXES_PER_ROW   # 128 -> each row is exactly one f32 vreg


def _giou_block_kernel(p_ref, g_ref, out_ref, *, eps, valid_rows_last):
    """One block: (tr, 128) rows of 32 boxes, coords interleaved x1,y1,x2,y2.

    Writes (1, 1, 128) per-lane-column partial sums; the x1-lane selection and
    the final scalar reduction are finished in the (tiny) wrapper epilogue.
    """
    p = p_ref[...].astype(jnp.float32)
    g = g_ref[...].astype(jnp.float32)

    def shift(x, k):
        # result[..., l] = x[..., (l + k) % 128].  The wrapped lanes only land
        # on x2/y2 result positions, which are never read as per-box results.
        # jnp.roll keeps the kernel portable (interpret + Mosaic); the row is
        # one 128-lane vreg so this is a cheap in-vreg lane rotate on HW.
        return jnp.roll(x, -k, axis=1)

    sp2 = shift(p, 2)                     # pred (x2, y2) aligned onto (x1, y1) lanes
    sg2 = shift(g, 2)                     # gt   (x2, y2) aligned onto (x1, y1) lanes

    dp = sp2 - p                          # pred width / height at (x1, y1) lanes
    dg = sg2 - g                          # gt   width / height
    di = jnp.maximum(jnp.minimum(sp2, sg2) - jnp.maximum(p, g), 0.0)  # inter w/h
    de = jnp.maximum(jnp.maximum(sp2, sg2) - jnp.minimum(p, g), 0.0)  # enclose w/h

    # Pairwise products: value at each x1 lane == w * h for that box.
    area_p = dp * shift(dp, 1)
    area_g = dg * shift(dg, 1)
    overlap = di * shift(di, 1)
    enclose = jnp.maximum(de * shift(de, 1), eps)

    union = jnp.maximum(area_p + area_g - overlap, eps)
    # loss = 1 - giou = 2 - overlap/union - union/enclose   (valid on x1 lanes)
    # TODO(synk): pl.reciprocal(x, approx=True) would push these divides onto
    # the EUP slot on real HW; exact divides kept for portability/accuracy.
    loss = 2.0 - overlap / union - union / enclose

    def _colsum(x):                       # (tr, 128) -> (1, 1, 128)
        return jnp.sum(x, axis=0, keepdims=True)[None]

    if valid_rows_last is None:
        # Every block is full: no masking anywhere on the hot path.
        out_ref[...] = _colsum(loss)
    else:
        # Only the ragged LAST block carries rows past the end of the input;
        # those rows hold undefined data (NaN-poisoned in interpret mode) and
        # must not contribute.
        is_last = pl.program_id(0) == pl.num_programs(0) - 1
        not_last = pl.program_id(0) != pl.num_programs(0) - 1

        @pl.when(is_last)
        def _():
            row = jax.lax.broadcasted_iota(jnp.int32, loss.shape, 0)
            out_ref[...] = _colsum(jnp.where(row < valid_rows_last, loss, 0.0))

        @pl.when(not_last)
        def _():
            out_ref[...] = _colsum(loss)


def _giou_loss_elem(pred, target, eps):
    """Plain-JAX per-box (1 - giou); used for the <32-box tail and as reference."""
    px1, py1, px2, py2 = (pred[..., 0], pred[..., 1], pred[..., 2], pred[..., 3])
    gx1, gy1, gx2, gy2 = (target[..., 0], target[..., 1], target[..., 2], target[..., 3])
    area_p = (px2 - px1) * (py2 - py1)
    area_g = (gx2 - gx1) * (gy2 - gy1)
    iw = jnp.maximum(jnp.minimum(px2, gx2) - jnp.maximum(px1, gx1), 0.0)
    ih = jnp.maximum(jnp.minimum(py2, gy2) - jnp.maximum(py1, gy1), 0.0)
    overlap = iw * ih
    union = jnp.maximum(area_p + area_g - overlap, eps)
    ew = jnp.maximum(jnp.maximum(px2, gx2) - jnp.minimum(px1, gx1), 0.0)
    eh = jnp.maximum(jnp.maximum(py2, gy2) - jnp.minimum(py1, gy1), 0.0)
    enclose = jnp.maximum(ew * eh, eps)
    gious = overlap / union - (enclose - union) / enclose
    return 1.0 - gious


def _giou_loss_sum_pallas(p2d, g2d, *, eps, tile_rows):
    """Sum of (1 - giou); p2d/g2d are (m, 4) float32 with m % 32 == 0."""
    m = p2d.shape[0]
    r = m // _BOXES_PER_ROW
    p = p2d.reshape(r, _LANES)      # free row-major reshape, lane-dense
    g = g2d.reshape(r, _LANES)

    tile_rows = max(8, (int(tile_rows) // 8) * 8)
    if r <= 8:
        tr = r                       # block == full sublane extent
    else:
        # prefer >= 2 balanced blocks when r allows so v7x megacore can shard
        tr = min(tile_rows, max(8, (((r + 1) // 2) // 8) * 8))
    grid = -(-r // tr)
    rem = r - (grid - 1) * tr
    valid_rows_last = None if rem == tr else rem   # static (trace-time) choice

    kernel = functools.partial(_giou_block_kernel, eps=float(eps),
                               valid_rows_last=valid_rows_last)

    cost = pl.CostEstimate(
        flops=int(30 * m),
        transcendentals=0,
        bytes_accessed=int(2 * m * 4 * 4 + grid * _LANES * 4),
    )

    psums = pl.pallas_call(
        kernel,
        out_shape=jax.ShapeDtypeStruct((grid, 1, _LANES), jnp.float32),
        grid=(grid,),
        in_specs=[
            pl.BlockSpec((tr, _LANES), lambda i: (i, 0)),
            pl.BlockSpec((tr, _LANES), lambda i: (i, 0)),
        ],
        out_specs=pl.BlockSpec((1, 1, _LANES), lambda i: (i, 0, 0)),
        compiler_params=pltpu.CompilerParams(
            dimension_semantics=("parallel",),
            vmem_limit_bytes=32 * 1024 * 1024,
        ),
        cost_estimate=cost,
    )(p, g)

    # Tiny epilogue: keep only the x1 lane of each 4-lane group and reduce.
    return jnp.sum(psums.reshape(-1, 4)[:, 0])


def giou_loss_reduced(pred, target, *, eps=1e-6, reduction="mean",
                      avg_factor=None, loss_weight=1.0, tile_rows=2048):
    """loss_weight * reduce(1 - giou(pred, target)).  pred/target: (..., 4) xyxy."""
    assert pred.shape == target.shape and pred.shape[-1] == 4
    if reduction not in ("mean", "sum"):
        # TODO(synk): reduction='none' needs a per-box output path (strided
        # lane scatter); only 'mean' / 'sum' are ported to the Pallas kernel.
        raise NotImplementedError(f"reduction={reduction!r} not supported")

    lead = pred.shape[:-1]
    m = int(math.prod(lead)) if lead else 1

    # TODO(synk): bf16/f16 boxes could be fed natively (cast inside the kernel)
    # to halve HBM read traffic on v5e; kept as a wrapper cast for simplicity.
    p = jnp.asarray(pred, jnp.float32).reshape(m, 4)
    g = jnp.asarray(target, jnp.float32).reshape(m, 4)

    m_main = (m // _BOXES_PER_ROW) * _BOXES_PER_ROW
    total = jnp.float32(0.0)
    if m_main > 0:
        p_main = p if m_main == m else p[:m_main]
        g_main = g if m_main == m else g[:m_main]
        total = total + _giou_loss_sum_pallas(p_main, g_main, eps=eps,
                                              tile_rows=tile_rows)
    if m_main < m:
        # <=31 leftover boxes: finish in plain JAX rather than padding the full
        # array in HBM (the pad was a complete extra read+write pass).
        total = total + jnp.sum(_giou_loss_elem(p[m_main:], g[m_main:], eps))

    if reduction == "sum":
        out = total
    else:  # mean
        denom = (jnp.float32(m) if avg_factor is None
                 else jnp.asarray(avg_factor, jnp.float32))
        out = total / denom
    return loss_weight * out


class MyGIoULoss:
    """Pallas port of the PyTorch MyGIoULoss forward pass."""

    def __init__(self, eps=1e-6, reduction="mean", loss_weight=1.0):
        self.eps = eps
        self.reduction = reduction
        self.loss_weight = loss_weight

    def __call__(self, pred, target, weight=None, avg_factor=None,
                 reduction_override=None, **kwargs):
        assert reduction_override in (None, "none", "mean", "sum")
        reduction = reduction_override if reduction_override else self.reduction
        if weight is not None:
            # TODO(synk): per-box `weight` (and the all-zero-weight early exit)
            # is not ported to the Pallas path.
            raise NotImplementedError("per-box `weight` is not supported")
        return giou_loss_reduced(pred, target, eps=self.eps,
                                 reduction=reduction, avg_factor=avg_factor,
                                 loss_weight=self.loss_weight)


if __name__ == "__main__":
    key = jax.random.PRNGKey(0)
    k1, k2, k3, k4 = jax.random.split(key, 4)

    # Small shapes: 2 * 64 = 128 aligned box pairs, (n, 4) xyxy.
    B, N = 2, 64
    p_cxy = jax.random.uniform(k1, (B, N, 2), minval=2.0, maxval=14.0)
    p_wh = jax.random.uniform(k2, (B, N, 2), minval=0.5, maxval=4.0)
    g_cxy = p_cxy + jax.random.uniform(k3, (B, N, 2), minval=-1.0, maxval=1.0)
    g_wh = jax.random.uniform(k4, (B, N, 2), minval=0.5, maxval=4.0)

    pred = jnp.concatenate([p_cxy - p_wh / 2, p_cxy + p_wh / 2], axis=-1)
    target = jnp.concatenate([g_cxy - g_wh / 2, g_cxy + g_wh / 2], axis=-1)
    pred = pred.reshape(-1, 4).astype(jnp.float32)      # (128, 4)
    target = target.reshape(-1, 4).astype(jnp.float32)  # (128, 4)

    model = MyGIoULoss(eps=1e-6, reduction="mean", loss_weight=1.0)
    ref_elem = _giou_loss_elem(pred, target, 1e-6)

    # default 'mean' reduction
    out_mean = jax.block_until_ready(model(pred, target))
    ref_mean = jnp.mean(ref_elem)
    assert out_mean.shape == ()
    assert jnp.allclose(out_mean, ref_mean, rtol=1e-4, atol=1e-4), (out_mean, ref_mean)

    # 'sum' reduction override
    out_sum = jax.block_until_ready(model(pred, target, reduction_override="sum"))
    assert jnp.allclose(out_sum, jnp.sum(ref_elem), rtol=1e-4, atol=1e-3), out_sum

    # ragged box count (not a multiple of 32): kernel main path + plain-JAX tail
    out_rag = jax.block_until_ready(model(pred[:100], target[:100]))
    ref_rag = jnp.mean(_giou_loss_elem(pred[:100], target[:100], 1e-6))
    assert jnp.allclose(out_rag, ref_rag, rtol=1e-4, atol=1e-4), (out_rag, ref_rag)

    # multi-block grid with a ragged (row-masked) last block: 640 boxes -> 20
    # rows, tile_rows=8 -> grid=3, last block has 4 valid rows.
    kc, kw, kgc, kgw = jax.random.split(k2, 4)
    M2 = 640
    c = jax.random.uniform(kc, (M2, 2), minval=2.0, maxval=30.0)
    w = jax.random.uniform(kw, (M2, 2), minval=0.5, maxval=6.0)
    gc = c + jax.random.uniform(kgc, (M2, 2), minval=-2.0, maxval=2.0)
    gw = jax.random.uniform(kgw, (M2, 2), minval=0.5, maxval=6.0)
    pred_b = jnp.concatenate([c - w / 2, c + w / 2], axis=-1).astype(jnp.float32)
    target_b = jnp.concatenate([gc - gw / 2, gc + gw / 2], axis=-1).astype(jnp.float32)
    out_big = jax.block_until_ready(
        giou_loss_reduced(pred_b, target_b, eps=1e-6, reduction="mean", tile_rows=8))
    ref_big = jnp.mean(_giou_loss_elem(pred_b, target_b, 1e-6))
    assert jnp.allclose(out_big, ref_big, rtol=1e-4, atol=1e-4), (out_big, ref_big)

    print("KERNEL_OK")
</pallas_src>

<mosaic_0001>
module attributes {stable_mosaic.version = 11 : i64} {
  func.func @_giou_block_kernel(%arg0: i32, %arg1: memref<4x128xf32, #tpu.memory_space<vmem>>, %arg2: memref<4x128xf32, #tpu.memory_space<vmem>>, %arg3: memref<1x1x128xf32, #tpu.memory_space<vmem>>) attributes {dimension_semantics = [#tpu.dimension_semantics<parallel>], iteration_bounds = array<i64: 1>, scalar_prefetch = 0 : i64, scratch_operands = 0 : i64, tpu.core_type = #tpu.core_type<tc>, window_params = [{transform_indices = @transform_0, window_bounds = array<i64: 4, 128>}, {transform_indices = @transform_1, window_bounds = array<i64: 4, 128>}, {transform_indices = @transform_2, window_bounds = array<i64: 1, 1, 128>}]} {
    %c0 = arith.constant 0 : index
    %c0_0 = arith.constant 0 : index
    %0 = vector.load %arg1[%c0, %c0_0] : memref<4x128xf32, #tpu.memory_space<vmem>>, vector<4x128xf32>
    %c0_1 = arith.constant 0 : index
    %c0_2 = arith.constant 0 : index
    %1 = vector.load %arg2[%c0_1, %c0_2] : memref<4x128xf32, #tpu.memory_space<vmem>>, vector<4x128xf32>
    %2 = vector.extract_strided_slice %0 {offsets = [0, 2], sizes = [4, 126], strides = [1, 1]} : vector<4x128xf32> to vector<4x126xf32>
    %3 = vector.extract_strided_slice %0 {offsets = [0, 0], sizes = [4, 2], strides = [1, 1]} : vector<4x128xf32> to vector<4x2xf32>
    %4 = tpu.concatenate %2, %3 in 1 : vector<4x126xf32>, vector<4x2xf32> -> vector<4x128xf32>
    %5 = vector.extract_strided_slice %1 {offsets = [0, 2], sizes = [4, 126], strides = [1, 1]} : vector<4x128xf32> to vector<4x126xf32>
    %6 = vector.extract_strided_slice %1 {offsets = [0, 0], sizes = [4, 2], strides = [1, 1]} : vector<4x128xf32> to vector<4x2xf32>
    %7 = tpu.concatenate %5, %6 in 1 : vector<4x126xf32>, vector<4x2xf32> -> vector<4x128xf32>
    %8 = arith.subf %4, %0 : vector<4x128xf32>
    %9 = arith.subf %7, %1 : vector<4x128xf32>
    %10 = arith.minimumf %4, %7 : vector<4x128xf32>
    %11 = arith.maximumf %0, %1 : vector<4x128xf32>
    %12 = arith.subf %10, %11 : vector<4x128xf32>
    %cst = arith.constant 0.000000e+00 : f32
    %13 = vector.broadcast %cst : f32 to vector<4x128xf32>
    %14 = arith.maximumf %12, %13 : vector<4x128xf32>
    %15 = arith.maximumf %4, %7 : vector<4x128xf32>
    %16 = arith.minimumf %0, %1 : vector<4x128xf32>
    %17 = arith.subf %15, %16 : vector<4x128xf32>
    %cst_3 = arith.constant 0.000000e+00 : f32
    %18 = vector.broadcast %cst_3 : f32 to vector<4x128xf32>
    %19 = arith.maximumf %17, %18 : vector<4x128xf32>
    %20 = vector.extract_strided_slice %8 {offsets = [0, 1], sizes = [4, 127], strides = [1, 1]} : vector<4x128xf32> to vector<4x127xf32>
    %21 = vector.extract_strided_slice %8 {offsets = [0, 0], sizes = [4, 1], strides = [1, 1]} : vector<4x128xf32> to vector<4x1xf32>
    %22 = tpu.concatenate %20, %21 in 1 : vector<4x127xf32>, vector<4x1xf32> -> vector<4x128xf32>
    %23 = arith.mulf %8, %22 : vector<4x128xf32>
    %24 = vector.extract_strided_slice %9 {offsets = [0, 1], sizes = [4, 127], strides = [1, 1]} : vector<4x128xf32> to vector<4x127xf32>
    %25 = vector.extract_strided_slice %9 {offsets = [0, 0], sizes = [4, 1], strides = [1, 1]} : vector<4x128xf32> to vector<4x1xf32>
    %26 = tpu.concatenate %24, %25 in 1 : vector<4x127xf32>, vector<4x1xf32> -> vector<4x128xf32>
    %27 = arith.mulf %9, %26 : vector<4x128xf32>
    %28 = vector.extract_strided_slice %14 {offsets = [0, 1], sizes = [4, 127], strides = [1, 1]} : vector<4x128xf32> to vector<4x127xf32>
    %29 = vector.extract_strided_slice %14 {offsets = [0, 0], sizes = [4, 1], strides = [1, 1]} : vector<4x128xf32> to vector<4x1xf32>
    %30 = tpu.concatenate %28, %29 in 1 : vector<4x127xf32>, vector<4x1xf32> -> vector<4x128xf32>
    %31 = arith.mulf %14, %30 : vector<4x128xf32>
    %32 = vector.extract_strided_slice %19 {offsets = [0, 1], sizes = [4, 127], strides = [1, 1]} : vector<4x128xf32> to vector<4x127xf32>
    %33 = vector.extract_strided_slice %19 {offsets = [0, 0], sizes = [4, 1], strides = [1, 1]} : vector<4x128xf32> to vector<4x1xf32>
    %34 = tpu.concatenate %32, %33 in 1 : vector<4x127xf32>, vector<4x1xf32> -> vector<4x128xf32>
    %35 = arith.mulf %19, %34 : vector<4x128xf32>
    %cst_4 = arith.constant 9.99999997E-7 : f32
    %36 = vector.broadcast %cst_4 : f32 to vector<4x128xf32>
    %37 = arith.maximumf %35, %36 : vector<4x128xf32>
    %38 = arith.addf %23, %27 : vector<4x128xf32>
    %39 = arith.subf %38, %31 : vector<4x128xf32>
    %cst_5 = arith.constant 9.99999997E-7 : f32
    %40 = vector.broadcast %cst_5 : f32 to vector<4x128xf32>
    %41 = arith.maximumf %39, %40 : vector<4x128xf32>
    %42 = arith.divf %31, %41 : vector<4x128xf32>
    %cst_6 = arith.constant 2.000000e+00 : f32
    %43 = vector.broadcast %cst_6 : f32 to vector<4x128xf32>
    %44 = arith.subf %43, %42 : vector<4x128xf32>
    %45 = arith.divf %41, %37 : vector<4x128xf32>
    %46 = arith.subf %44, %45 : vector<4x128xf32>
    %cst_7 = arith.constant dense<0.000000e+00> : vector<128xf32>
    %47 = vector.multi_reduction <add>, %46, %cst_7 [0] : vector<4x128xf32> to vector<128xf32>
    %48 = vector.shape_cast %47 : vector<128xf32> to vector<1x128xf32>
    %49 = vector.shape_cast %48 : vector<1x128xf32> to vector<1x1x128xf32>
    %c0_8 = arith.constant 0 : index
    %c0_9 = arith.constant 0 : index
    %c0_10 = arith.constant 0 : index
    %50 = vector.load %arg3[%c0_8, %c0_9, %c0_10] : memref<1x1x128xf32, #tpu.memory_space<vmem>>, vector<1x1x128xf32>
    tpu.vector_store %arg3[%c0_8, %c0_9, %c0_10], %49 {strides = array<i32>} : memref<1x1x128xf32, #tpu.memory_space<vmem>>, vector<1x1x128xf32>,
    return
  }
  func.func @transform_0(%arg0: i32) -> (i32, i32) {
    %c0_i32 = arith.constant 0 : i32
    %c0_i32_0 = arith.constant 0 : i32
    return %arg0, %c0_i32 : i32, i32
  }
  func.func @transform_1(%arg0: i32) -> (i32, i32) {
    %c0_i32 = arith.constant 0 : i32
    %c0_i32_0 = arith.constant 0 : i32
    return %arg0, %c0_i32 : i32, i32
  }
  func.func @transform_2(%arg0: i32) -> (i32, i32, i32) {
    %c0_i32 = arith.constant 0 : i32
    %c0_i32_0 = arith.constant 0 : i32
    %c0_i32_1 = arith.constant 0 : i32
    return %arg0, %c0_i32, %c0_i32_0 : i32, i32, i32
  }
}

</mosaic_0001>

<llo_original>
// kernel: tpu_custom_call.1
$region0: #{tpu_custom_call.1}
  #allocation0 [shape = 'u32[]', space=smem, size = 0x4, offset = 0x4, fixed_abs, tag = 'smem constant byte address 0x4 - core index']
  #allocation1 [shape = 'u32[144,128]{1,0:T(1,128)}', space=vmem, size = 0x12000, scoped, tag = 'internal scratch']
  %s0 = inlined_call_operand.hbm [shape: f32[4,128], index: 0, kind: input, shape index: {}]
  %s1 = inlined_call_operand.hbm [shape: f32[4,128], index: 1, kind: input, shape index: {}]
  %s2 = inlined_call_operand.hbm [shape: f32[1,1,128], index: 2, kind: output, shape index: {}]
  %s3 = sld [smem:[#allocation0]]
  $region26: #{tpu_custom_call.1} parent=0
    _
  %s5 = ssub.s32 1, %s3
  %s6 = scalar_select 0, %s5, %s3
  $region1: #{tpu_custom_call.1} parent=0
    #allocation2 [shape = 'u8[2048]{0}', space=vmem, size = 0x800, scoped, tag = 'input window, operand 0, single buffered']
    #allocation3 [shape = 's32[1]{0}', space=sflag, size = 0x4, scoped, tag = 'scoped memory for tpu_custom_call.1']
    #allocation4 [shape = 's32[1]{0}', space=sflag, size = 0x4, scoped, tag = 'scoped memory for tpu_custom_call.1']
    #allocation5 [shape = 'u8[2048]{0}', space=vmem, size = 0x800, scoped, tag = 'input window, operand 1, single buffered']
    #allocation6 [shape = 's32[1]{0}', space=sflag, size = 0x4, scoped, tag = 'scoped memory for tpu_custom_call.1']
    #allocation7 [shape = 'u8[512]{0}', space=vmem, size = 0x400, scoped, tag = 'output window, operand 0, single buffered']
    %7 = vsyncpa [#allocation3], 0
    %8 = vsyncpa [#allocation6], 0
    %9 = vsyncpa [#allocation4], 0
    // Predicated region
    $region2: #{tpu_custom_call.1} parent=1 // pred_check
      _
    $region3: #{tpu_custom_call.1} parent=1 // pred_check_branch
      %11 = sbr.rel (0) target = $region5
    $region4: #{tpu_custom_call.1} parent=1 // pred_region
      %s13 = ssub.s32 64, 64
      %14 = vsyncadd [#allocation3], %s13
      %s16 = sshll.u32 [#allocation2], 4
      %s17 = int_to_ptr.vmem [resolvable:$true] %s16
      %19 = dma.hbm_to_vmem [thread:$0]  %s0, 64, %s17, [#allocation3]
    $region5: #{tpu_custom_call.1} parent=1 // pred_fallthru
      _
    // Predicated region
    $region6: #{tpu_custom_call.1} parent=1 // pred_check
      _
    $region7: #{tpu_custom_call.1} parent=1 // pred_check_branch
      %21 = sbr.rel (0) target = $region9
    $region8: #{tpu_custom_call.1} parent=1 // pred_region
      %s23 = ssub.s32 64, 64
      %24 = vsyncadd [#allocation6], %s23
      %s26 = sshll.u32 [#allocation5], 4
      %s27 = int_to_ptr.vmem [resolvable:$true] %s26
      %29 = dma.hbm_to_vmem [thread:$0]  %s1, 64, %s27, [#allocation6]
    $region9: #{tpu_custom_call.1} parent=1 // pred_fallthru
      _
    // Predicated region
    $region10: #{tpu_custom_call.1} parent=1 // pred_check
      _
    $region11: #{tpu_custom_call.1} parent=1 // pred_check_branch
      %31 = sbr.rel (0) target = $region13
    $region12: #{tpu_custom_call.1} parent=1 // pred_region
      %32 = dma.done [#allocation3], 64
    $region13: #{tpu_custom_call.1} parent=1 // pred_fallthru
      _
    // Predicated region
    $region14: #{tpu_custom_call.1} parent=1 // pred_check
      _
    $region15: #{tpu_custom_call.1} parent=1 // pred_check_branch
      %34 = sbr.rel (0) target = $region17
    $region16: #{tpu_custom_call.1} parent=1 // pred_region
      %35 = dma.done [#allocation6], 64
    $region17: #{tpu_custom_call.1} parent=1 // pred_fallthru
      _
    %v36 = vld [vmem:[#allocation2] sm:$0xf]
    %v37 = vld [vmem:[#allocation5] sm:$0xf]
    %39 = vrot.lane.b32.xlu0 %v36, 126
    %v40 = vpop.permute.xlu0 %39
    %43 = vrot.lane.b32.xlu0 %v37, 126
    %v44 = vpop.permute.xlu0 %43
    %v46 = vsub.f32 %v40, %v36
    %v47 = vsub.f32 %v44, %v37
    %v48 = vmin.f32 %v40, %v44
    %v49 = vmax.f32 %v36, %v37
    %v50 = vsub.f32 %v48, %v49
    %v51 = vmax.f32 %v50, 0.0
    %v52 = vmax.f32 %v40, %v44
    %v53 = vmin.f32 %v36, %v37
    %v54 = vsub.f32 %v52, %v53
    %v55 = vmax.f32 %v54, 0.0
    %57 = vrot.lane.b32.xlu0 %v46, 127
    %v58 = vpop.permute.xlu0 %57
    %v60 = vmul.f32 %v46, %v58
    %62 = vrot.lane.b32.xlu0 %v47, 127
    %v63 = vpop.permute.xlu0 %62
    %v65 = vmul.f32 %v47, %v63
    %67 = vrot.lane.b32.xlu0 %v51, 127
    %v68 = vpop.permute.xlu0 %67
    %v70 = vmul.f32 %v51, %v68
    %72 = vrot.lane.b32.xlu0 %v55, 127
    %v73 = vpop.permute.xlu0 %72
    %v75 = vmul.f32 %v55, %v73
    %v76 = vmax.f32 %v75, 1e-06
    %v77 = vadd.f32 %v60, %v65
    %v78 = vsub.f32 %v77, %v70
    %v79 = vmax.f32 %v78, 1e-06
    %v80 = vrcp.pop %v79
    %v81 = vmul.f32 %v70, %v80
    %v82 = vsub.f32 2.0, %v81
    %v83 = vrcp.pop %v76
    %v84 = vmul.f32 %v79, %v83
    %v85 = vsub.f32 %v82, %v84
    %vm86 = vcmask 1043456
    %v87 = vsel %vm86, %v85, 0.0
    %v88 = vrot.slane %v87, 4
    %v89 = vadd.f32 %v87, %v88
    %v90 = vrot.slane %v89, 2
    %v91 = vadd.f32 %v89, %v90
    %v92 = vrot.slane %v91, 1
    %v93 = vadd.f32 %v91, %v92
    %94 = vst [vmem:[#allocation7] sm:$0x1] %v93
    // Predicated region
    $region18: #{tpu_custom_call.1} parent=1 // pred_check
      _
    $region19: #{tpu_custom_call.1} parent=1 // pred_check_branch
      %96 = sbr.rel (0) target = $region21
    $region20: #{tpu_custom_call.1} parent=1 // pred_region
      %s98 = ssub.s32 16, 16
      %99 = vsyncadd [#allocation4], %s98
      %s101 = sshll.u32 [#allocation7], 4
      %s102 = int_to_ptr.vmem [resolvable:$true] %s101
      %104 = dma.vmem_to_hbm [thread:$0]  %s102, 16, %s2, [#allocation4]
    $region21: #{tpu_custom_call.1} parent=1 // pred_fallthru
      _
    // Predicated region
    $region22: #{tpu_custom_call.1} parent=1 // pred_check
      _
    $region23: #{tpu_custom_call.1} parent=1 // pred_check_branch
      %106 = sbr.rel (0) target = $region25
    $region24: #{tpu_custom_call.1} parent=1 // pred_region
      %107 = dma.done [#allocation4], 16
    $region25: #{tpu_custom_call.1} parent=1 // pred_fallthru
      _
    %108 = vsyncpa [#allocation3], 1
    %109 = vsyncpa [#allocation6], 1
    %110 = vsyncpa [#allocation4], 1

</llo_original>
